<compile_context>
chip_gen: v7x
topology: tpu7x:2x2x1
jax: 0.10.0
libtpu: 0.0.40
codegen_flags: <defaults>
</compile_context>

<pallas_src>
import functools

import jax
import jax.numpy as jnp
from jax.experimental import pallas as pl
from jax.experimental.pallas import tpu as pltpu


def _roundup(a, b):
    return (a + b - 1) // b * b


def _convT_matmul_relu_kernel(xt_ref, w_ref, b_ref, o_ref):
    # xt_ref: (1, K, TM)   w_ref: (Cout, K)   b_ref: (Cout, 1)   o_ref: (1, Cout, TM)
    acc = jnp.dot(w_ref[...], xt_ref[0], preferred_element_type=jnp.float32)
    acc = acc + b_ref[...]                      # bias broadcast over the lane (M) axis
    o_ref[0] = jnp.maximum(acc, 0.0).astype(o_ref.dtype)


def _vmem_capacity_bytes():
    cap = 64 * 1024 * 1024                      # conservative default (v7x per-TC VMEM)
    try:
        info = pltpu.get_tpu_info()
        cap = int(getattr(info, "vmem_capacity_bytes", cap))
    except Exception:
        pass
    return cap


def _auto_tile_m(k, cout, x_bytes, o_bytes, w_bytes, vmem_cap):
    """Largest lane tile (multiple of 128) whose double-buffered streams fit ~70% of VMEM."""
    budget = int(vmem_cap * 0.70)
    fixed = 2 * (_roundup(cout, 8) * _roundup(k, 128) * w_bytes      # weight (x2 buffers)
                 + _roundup(cout, 8) * 128 * 4)                      # bias   (x2 buffers)
    per_col = 2 * (_roundup(k, 8) * x_bytes + _roundup(cout, 8) * o_bytes)
    tm = max(budget - fixed, per_col * 128) // per_col
    tm = max(128, (tm // 128) * 128)
    return min(tm, 32768)


def downsampling_conv_block(x, weight, bias, stride=2, *, stream_dtype=None, tile_m=None):
    """Forward of DownsamplingConvBlock(normalization='none').

    x: (N, Cin, D, H, W); weight: (Cout, Cin, s, s, s); bias: (Cout,).
    stream_dtype: optional dtype (e.g. jnp.bfloat16) for the streamed X^T / W tiles;
                  accumulation, bias add, ReLU and the output stay float32.
    """
    n, cin, d, h, w = x.shape
    cout = weight.shape[0]
    s = stride
    assert weight.shape == (cout, cin, s, s, s)
    assert d % s == 0 and h % s == 0 and w % s == 0
    do, ho, wo = d // s, h // s, w // s
    mo = do * ho * wo
    k = cin * s * s * s

    out_dtype = x.dtype
    xw_dtype = jnp.dtype(stream_dtype) if stream_dtype is not None else jnp.dtype(x.dtype)

    # --- glue: patchify to X^T (N, K, Mo), lane axis = output-spatial (pure layout work) ---
    # (N,Cin,Do,s,Ho,s,Wo,s) -> (N,Cin,s,s,s,Do,Ho,Wo) -> (N, K, Mo)
    xt = (x.reshape(n, cin, do, s, ho, s, wo, s)
           .transpose(0, 1, 3, 5, 7, 2, 4, 6)
           .reshape(n, k, mo)
           .astype(xw_dtype))                   # cast fuses into the transpose copy

    wt = weight.reshape(cout, k).astype(xw_dtype)     # (Cout, K) -- no transpose needed
    bt = bias.reshape(cout, 1).astype(jnp.float32)    # (Cout, 1) -- lane-broadcast in kernel

    # --- tile sizing from VMEM capacity (per TPU generation) ---
    vmem_cap = _vmem_capacity_bytes()
    if tile_m is None:
        tm = _auto_tile_m(k, cout, xw_dtype.itemsize, jnp.dtype(out_dtype).itemsize,
                          xw_dtype.itemsize, vmem_cap)
    else:
        tm = max(128, _roundup(tile_m, 128))
    if tm >= mo:
        tm = mo                                 # single spatial tile (full-dim block is legal)
        if n == 1 and mo >= 256:
            # keep >= 2 grid steps so both v7x TensorCores get work
            tm = min(mo, _roundup(-(-mo // 2), 128))
    n_sp = pl.cdiv(mo, tm)
    grid = (n, n_sp)

    # --- VMEM bookkeeping: actual double-buffered need + headroom (no blanket cap) ---
    lane_tm = _roundup(tm, 128)
    xt_tile_bytes = _roundup(k, 8) * lane_tm * xw_dtype.itemsize
    out_tile_bytes = _roundup(cout, 8) * lane_tm * jnp.dtype(out_dtype).itemsize
    w_bytes = _roundup(cout, 8) * _roundup(k, 128) * xw_dtype.itemsize
    b_bytes = _roundup(cout, 8) * 128 * 4
    vmem_need = 2 * (xt_tile_bytes + out_tile_bytes + w_bytes + b_bytes)
    vmem_limit = int(max(32 * 1024 * 1024,
                         min(vmem_need + 8 * 1024 * 1024, int(vmem_cap * 0.9))))

    cost = pl.CostEstimate(
        flops=2 * n * mo * k * cout,
        transcendentals=0,
        bytes_accessed=(n * mo * k * xw_dtype.itemsize
                        + cout * k * xw_dtype.itemsize
                        + n * mo * cout * jnp.dtype(out_dtype).itemsize),
    )

    yt = pl.pallas_call(
        _convT_matmul_relu_kernel,
        out_shape=jax.ShapeDtypeStruct((n, cout, mo), out_dtype),
        grid_spec=pltpu.PrefetchScalarGridSpec(
            num_scalar_prefetch=0,
            grid=grid,
            in_specs=[
                pl.BlockSpec((1, k, tm), lambda b, j: (b, 0, j)),   # X^T tile (lane-dense)
                pl.BlockSpec((cout, k), lambda b, j: (0, 0)),       # weight (resident)
                pl.BlockSpec((cout, 1), lambda b, j: (0, 0)),       # bias   (resident)
            ],
            out_specs=pl.BlockSpec((1, cout, tm), lambda b, j: (b, 0, j)),  # final layout
        ),
        compiler_params=pltpu.CompilerParams(
            dimension_semantics=("parallel", "parallel"),
            vmem_limit_bytes=vmem_limit,
        ),
        cost_estimate=cost,
    )(xt, wt, bt)

    # (N, Cout, Mo) -> (N, Cout, Do, Ho, Wo): minor-dim split only, no transpose, free.
    return yt.reshape(n, cout, do, ho, wo)


def _reference(x, weight, bias, stride=2):
    out = jax.lax.conv_general_dilated(
        x, weight,
        window_strides=(stride, stride, stride),
        padding="VALID",
        dimension_numbers=("NCDHW", "OIDHW", "NCDHW"),
    )
    out = out + bias.reshape(1, -1, 1, 1, 1)
    return jnp.maximum(out, 0.0)


if __name__ == "__main__":
    key = jax.random.PRNGKey(0)
    k_x, k_w, k_b = jax.random.split(key, 3)

    # small shapes consistent with the module: 3D volume input, stride=2
    N, CIN, COUT, D, H, W, S = 2, 4, 8, 16, 16, 16, 2

    x = jax.random.normal(k_x, (N, CIN, D, H, W), dtype=jnp.float32)

    # deterministic parameter init (PyTorch-like uniform fan-in bound)
    fan_in = CIN * S * S * S
    bound = 1.0 / (fan_in ** 0.5)
    weight = jax.random.uniform(k_w, (COUT, CIN, S, S, S),
                                minval=-bound, maxval=bound, dtype=jnp.float32)
    bias = jax.random.uniform(k_b, (COUT,),
                              minval=-bound, maxval=bound, dtype=jnp.float32)

    # exact (f32) path -- matches the PyTorch module semantics
    fn = jax.jit(functools.partial(downsampling_conv_block, stride=S))
    y = jax.block_until_ready(fn(x, weight, bias))

    y_ref = _reference(x, weight, bias, stride=S)
    assert y.shape == (N, COUT, D // S, H // S, W // S)
    assert jnp.allclose(y, y_ref, atol=1e-5, rtol=1e-5)

    # bf16-streaming path (halves HBM traffic; f32 accumulate) -- compare against a
    # reference computed on the same bf16-rounded inputs.
    fn_bf16 = jax.jit(functools.partial(downsampling_conv_block, stride=S,
                                        stream_dtype=jnp.bfloat16))
    y_bf16 = jax.block_until_ready(fn_bf16(x, weight, bias))
    y_ref_bf16 = _reference(x.astype(jnp.bfloat16).astype(jnp.float32),
                            weight.astype(jnp.bfloat16).astype(jnp.float32),
                            bias, stride=S)
    assert y_bf16.shape == y_ref_bf16.shape
    assert jnp.allclose(y_bf16, y_ref_bf16, atol=2e-2, rtol=2e-2)

    print("KERNEL_OK")
</pallas_src>

<mosaic_0001>
module attributes {stable_mosaic.version = 11 : i64} {
  func.func @_convT_matmul_relu_kernel(%arg0: i32, %arg1: i32, %arg2: memref<1x32x512xf32, #tpu.memory_space<vmem>>, %arg3: memref<8x32xf32, #tpu.memory_space<vmem>>, %arg4: memref<8x1xf32, #tpu.memory_space<vmem>>, %arg5: memref<1x8x512xf32, #tpu.memory_space<vmem>>) attributes {dimension_semantics = [#tpu.dimension_semantics<parallel>, #tpu.dimension_semantics<parallel>], iteration_bounds = array<i64: 2, 1>, scalar_prefetch = 0 : i64, scratch_operands = 0 : i64, tpu.core_type = #tpu.core_type<tc>, window_params = [{transform_indices = @transform_0, window_bounds = array<i64: 1, 32, 512>}, {pipeline_mode = #tpu.pipeline_mode<synchronous>, transform_indices = @transform_1, window_bounds = array<i64: 8, 32>}, {pipeline_mode = #tpu.pipeline_mode<synchronous>, transform_indices = @transform_2, window_bounds = array<i64: 8, 1>}, {transform_indices = @transform_3, window_bounds = array<i64: 1, 8, 512>}]} {
    %c0 = arith.constant 0 : index
    %c0_0 = arith.constant 0 : index
    %0 = vector.load %arg3[%c0, %c0_0] : memref<8x32xf32, #tpu.memory_space<vmem>>, vector<8x32xf32>
    %c0_1 = arith.constant 0 : index
    %c0_2 = arith.constant 0 : index
    %c0_3 = arith.constant 0 : index
    %1 = vector.load %arg2[%c0_1, %c0_2, %c0_3] : memref<1x32x512xf32, #tpu.memory_space<vmem>>, vector<1x32x512xf32>
    %2 = vector.shape_cast %1 : vector<1x32x512xf32> to vector<32x512xf32>
    %cst = arith.constant dense<0.000000e+00> : vector<8x512xf32>
    %3 = tpu.matmul %0, %2, %cst {dimension_numbers = #tpu.dot_dimension_numbers<[1], [0], [0], [1], [0, 0, 1, 1], [], []>} : vector<8x32xf32>, vector<32x512xf32>, vector<8x512xf32> -> vector<8x512xf32>
    %c0_4 = arith.constant 0 : index
    %c0_5 = arith.constant 0 : index
    %4 = vector.load %arg4[%c0_4, %c0_5] : memref<8x1xf32, #tpu.memory_space<vmem>>, vector<8x1xf32>
    %5 = vector.broadcast %4 : vector<8x1xf32> to vector<8x512xf32>
    %6 = arith.addf %3, %5 : vector<8x512xf32>
    %cst_6 = arith.constant 0.000000e+00 : f32
    %7 = vector.broadcast %cst_6 : f32 to vector<8x512xf32>
    %8 = arith.maximumf %6, %7 : vector<8x512xf32>
    %c0_7 = arith.constant 0 : index
    %c0_8 = arith.constant 0 : index
    %c0_9 = arith.constant 0 : index
    %9 = vector.load %arg5[%c0_7, %c0_8, %c0_9] : memref<1x8x512xf32, #tpu.memory_space<vmem>>, vector<1x8x512xf32>
    %10 = vector.shape_cast %9 : vector<1x8x512xf32> to vector<8x512xf32>
    %11 = vector.shape_cast %8 : vector<8x512xf32> to vector<1x8x512xf32>
    tpu.vector_store %arg5[%c0_7, %c0_8, %c0_9], %11 {strides = array<i32>} : memref<1x8x512xf32, #tpu.memory_space<vmem>>, vector<1x8x512xf32>,
    return
  }
  func.func @transform_0(%arg0: i32, %arg1: i32) -> (i32, i32, i32) {
    %c0_i32 = arith.constant 0 : i32
    %c0_i32_0 = arith.constant 0 : i32
    return %arg0, %c0_i32, %arg1 : i32, i32, i32
  }
  func.func @transform_1(%arg0: i32, %arg1: i32) -> (i32, i32) {
    %c0_i32 = arith.constant 0 : i32
    %c0_i32_0 = arith.constant 0 : i32
    %c0_i32_1 = arith.constant 0 : i32
    return %c0_i32, %c0_i32_0 : i32, i32
  }
  func.func @transform_2(%arg0: i32, %arg1: i32) -> (i32, i32) {
    %c0_i32 = arith.constant 0 : i32
    %c0_i32_0 = arith.constant 0 : i32
    %c0_i32_1 = arith.constant 0 : i32
    return %c0_i32, %c0_i32_0 : i32, i32
  }
  func.func @transform_3(%arg0: i32, %arg1: i32) -> (i32, i32, i32) {
    %c0_i32 = arith.constant 0 : i32
    %c0_i32_0 = arith.constant 0 : i32
    return %arg0, %c0_i32, %arg1 : i32, i32, i32
  }
}

</mosaic_0001>

<llo_original>
// kernel: downsampling_conv_block.1
$region0: #{downsampling_conv_block.1}
  #allocation0 [shape = 'u32[]', space=smem, size = 0x4, offset = 0x4, fixed_abs, tag = 'smem constant byte address 0x4 - core index']
  #allocation1 [shape = 'u32[144,128]{1,0:T(1,128)}', space=vmem, size = 0x12000, scoped, tag = 'internal scratch']
  %s0 = inlined_call_operand.vmem [shape: f32[2,32,512], index: 0, kind: input, shape index: {}]
  %s1 = inlined_call_operand.vmem [shape: f32[8,32], index: 1, kind: input, shape index: {}]
  %s2 = inlined_call_operand.vmem [shape: f32[8,1], index: 2, kind: input, shape index: {}]
  %s3 = inlined_call_operand.vmem [shape: f32[2,8,512], index: 3, kind: output, shape index: {}]
  %s4 = sld [smem:[#allocation0]]
  $region45: #{downsampling_conv_block.1} parent=0
    _
  %s6 = ssub.s32 1, %s4
  %s7 = scalar_select 0, %s6, %s4
  loop: start=0, step=1, limit=4
  $region2: #{downsampling_conv_block.1} parent=0 // loop_pre_header
    _
  $region3: #{downsampling_conv_block.1} parent=0 // loop_header
    %s9 = sphi 0, %s13
    %p10 = scmp.ge.s32.totalorder %s9, 4
    %s16 = sphi 0, %s28
    %s17 = sphi 0, %s24
    %s18 = sphi 0, %s16
    %s19 = sphi 0, %s17
    %s20 = sphi 0, %s18
    %s21 = sphi 0, %s19
    %s33 = sphi 0, %s35
    %s36 = sphi 0, %s33
    %s37 = sphi 0, %s36
    %s53 = sphi 0, %s37
    %s57 = sphi 0, %s57
    %s59 = sphi 0, %s57
    %s60 = sphi 0, %s59
    %s74 = sphi 0, %s60
    %s78 = sphi 0, %s78
    %s80 = sphi 0, %s78
    %s81 = sphi 0, %s80
    %s95 = sphi 0, %s81
    %s103 = sphi 0, %s105
    %s106 = sphi 0, %s103
    %s107 = sphi 0, %s106
    %s123 = sphi 0, %s107
  $region4: #{downsampling_conv_block.1} parent=0 // loop_header_branch
    %12 = sbr.rel (%p10) target = $region8
  $region5: #{downsampling_conv_block.1} parent=0 // loop_body
    %s14 = ssub.s32 %s9, 1
    %s15 = ssub.s32 %s9, 2
    %s22 = sadd.s32 1, %s17
    %p23 = scmp.ge.s32.totalorder %s22, 1
    %s24 = scalar_select %p23, 0, %s22
    %s25 = sadd.s32 1, %s16
    %s26 = scalar_select %p23, %s25, %s16
    %p27 = scmp.ge.s32.totalorder %s26, 2
    %s28 = scalar_select %p27, 0, %s26
    %s29 = ssub.s32 %s16, %s28
    %s30 = ssub.s32 %s17, %s24
    %s31 = sor.u32 %s29, %s30
    %p32 = scmp.eq.s32.totalorder %s31, 0
    %s34 = sadd.s32 %s33, 1
    %s35 = scalar_select %p32, %s33, %s34
    %p38 = pneg %p32
    %p39 = scmp.eq.s32.totalorder %s9, 1
    %p40 = por %p38, %p39
    %p41 = scmp.ne.s32.totalorder %s33, %s36
    %p42 = scmp.eq.s32.totalorder %s9, 0
    %p43 = por %p41, %p42
    %p44 = scmp.ne.s32.totalorder %s33, %s36
    %p45 = scmp.eq.s32.totalorder %s14, 1
    %p46 = por %p44, %p45
    %p47 = scmp.ne.s32.totalorder %s36, %s37
    %p48 = scmp.eq.s32.totalorder %s14, 0
    %p49 = por %p47, %p48
    %p50 = scmp.ne.s32.totalorder %s36, %s37
    %p51 = scmp.eq.s32.totalorder %s15, 1
    %p52 = por %p50, %p51
    %p54 = scmp.ne.s32.totalorder %s37, %s53
    %p55 = scmp.eq.s32.totalorder %s15, 0
    %p56 = por %p54, %p55
    %s58 = sadd.s32 %s57, 1
    %p61 = scmp.eq.s32.totalorder %s9, 1
    %p62 = scmp.ne.s32.totalorder %s57, %s59
    %p63 = scmp.eq.s32.totalorder %s9, 0
    %p64 = por %p62, %p63
    %p65 = scmp.ne.s32.totalorder %s57, %s59
    %p66 = scmp.eq.s32.totalorder %s14, 1
    %p67 = por %p65, %p66
    %p68 = scmp.ne.s32.totalorder %s59, %s60
    %p69 = scmp.eq.s32.totalorder %s14, 0
    %p70 = por %p68, %p69
    %p71 = scmp.ne.s32.totalorder %s59, %s60
    %p72 = scmp.eq.s32.totalorder %s15, 1
    %p73 = por %p71, %p72
    %p75 = scmp.ne.s32.totalorder %s60, %s74
    %p76 = scmp.eq.s32.totalorder %s15, 0
    %p77 = por %p75, %p76
    %s79 = sadd.s32 %s78, 1
    %p82 = scmp.eq.s32.totalorder %s9, 1
    %p83 = scmp.ne.s32.totalorder %s78, %s80
    %p84 = scmp.eq.s32.totalorder %s9, 0
    %p85 = por %p83, %p84
    %p86 = scmp.ne.s32.totalorder %s78, %s80
    %p87 = scmp.eq.s32.totalorder %s14, 1
    %p88 = por %p86, %p87
    %p89 = scmp.ne.s32.totalorder %s80, %s81
    %p90 = scmp.eq.s32.totalorder %s14, 0
    %p91 = por %p89, %p90
    %p92 = scmp.ne.s32.totalorder %s80, %s81
    %p93 = scmp.eq.s32.totalorder %s15, 1
    %p94 = por %p92, %p93
    %p96 = scmp.ne.s32.totalorder %s81, %s95
    %p97 = scmp.eq.s32.totalorder %s15, 0
    %p98 = por %p96, %p97
    %s99 = ssub.s32 %s16, %s28
    %s100 = ssub.s32 %s17, %s24
    %s101 = sor.u32 %s99, %s100
    %p102 = scmp.eq.s32.totalorder %s101, 0
    %s104 = sadd.s32 %s103, 1
    %s105 = scalar_select %p102, %s103, %s104
    %p108 = pneg %p102
    %p109 = scmp.eq.s32.totalorder %s9, 1
    %p110 = por %p108, %p109
    %p111 = scmp.ne.s32.totalorder %s103, %s106
    %p112 = scmp.eq.s32.totalorder %s9, 0
    %p113 = por %p111, %p112
    %p114 = scmp.ne.s32.totalorder %s103, %s106
    %p115 = scmp.eq.s32.totalorder %s14, 1
    %p116 = por %p114, %p115
    %p117 = scmp.ne.s32.totalorder %s106, %s107
    %p118 = scmp.eq.s32.totalorder %s14, 0
    %p119 = por %p117, %p118
    %p120 = scmp.ne.s32.totalorder %s106, %s107
    %p121 = scmp.eq.s32.totalorder %s15, 1
    %p122 = por %p120, %p121
    %p124 = scmp.ne.s32.totalorder %s107, %s123
    %p125 = scmp.eq.s32.totalorder %s15, 0
    %p126 = por %p124, %p125
    %p127 = scmp.le.s32.totalorder 1, %s9
    %p128 = scmp.lt.s32.totalorder %s9, 3
    %p129 = pnand %p127, %p128
    %p130 = pneg %p129
    // Predicated region
    $region9: #{downsampling_conv_block.1} parent=5 // pred_check
      _
    $region10: #{downsampling_conv_block.1} parent=5 // pred_check_branch
      %132 = sbr.rel (%p129) target = $region12
    $region11: #{downsampling_conv_block.1} parent=5 // pred_region
      %s133 = ssub.s32 %s9, 1
      // Predicated region
      $region13: #{downsampling_conv_block.1} parent=11 // pred_check
        %p134 = pneg %p70
      $region14: #{downsampling_conv_block.1} parent=11 // pred_check_branch
        %136 = sbr.rel (%p134) target = $region16
      $region15: #{downsampling_conv_block.1} parent=11 // pred_region
        _
      $region16: #{downsampling_conv_block.1} parent=11 // pred_fallthru
        _
      // Predicated region
      $region17: #{downsampling_conv_block.1} parent=11 // pred_check
        %p137 = pneg %p91
      $region18: #{downsampling_conv_block.1} parent=11 // pred_check_branch
        %139 = sbr.rel (%p137) target = $region20
      $region19: #{downsampling_conv_block.1} parent=11 // pred_region
        _
      $region20: #{downsampling_conv_block.1} parent=11 // pred_fallthru
        _
    $region12: #{downsampling_conv_block.1} parent=5 // pred_fallthru
      _
    %p140 = scmp.lt.s32.totalorder %s9, 2
    // Predicated region
    $region21: #{downsampling_conv_block.1} parent=5 // pred_check
      %p141 = pneg %p140
    $region22: #{downsampling_conv_block.1} parent=5 // pred_check_branch
      %143 = sbr.rel (%p141) target = $region24
    $region23: #{downsampling_conv_block.1} parent=5 // pred_region
      // Predicated region
      $region25: #{downsampling_conv_block.1} parent=23 // pred_check
        %p144 = pneg %p43
      $region26: #{downsampling_conv_block.1} parent=23 // pred_check_branch
        %146 = sbr.rel (%p144) target = $region28
      $region27: #{downsampling_conv_block.1} parent=23 // pred_region
        %s147 = smul.u32 4, %s17
        %p148 = scmp.lt.s32.totalorder %s16, 1
        %s149 = scalar_select %p148, %s16, 1
        %p150 = scmp.lt.s32.totalorder %s147, 3
        %s151 = scalar_select %p150, %s147, 3
        %s152 = smul.addr %s149, 16
        %s153 = sadd.s32 %s151, %s152
        %s154 = smul.addr %s153, 8
        %s155 = scalar_lea.vmem %s0, %s154
        %s156 = smul.u32 4, %s17
      $region28: #{downsampling_conv_block.1} parent=23 // pred_fallthru
        _
    $region24: #{downsampling_conv_block.1} parent=5 // pred_fallthru
      _
    %p157 = scmp.le.s32.totalorder 1, %s9
    %p158 = scmp.lt.s32.totalorder %s9, 3
    %p159 = pnand %p157, %p158
    %p160 = pneg %p159
    // Predicated region
    $region29: #{downsampling_conv_block.1} parent=5 // pred_check
      _
    $region30: #{downsampling_conv_block.1} parent=5 // pred_check_branch
      %162 = sbr.rel (%p159) target = $region32
    $region31: #{downsampling_conv_block.1} parent=5 // pred_region
      %s163 = ssub.s32 %s9, 1
      %s164 = smul.u32 4, %s19
      %p165 = scmp.lt.s32.totalorder %s18, 1
      %s166 = scalar_select %p165, %s18, 1
      %p167 = scmp.lt.s32.totalorder %s164, 3
      %s168 = scalar_select %p167, %s164, 3
      %s169 = smul.addr %s166, 16
      %s170 = sadd.s32 %s168, %s169
      %s171 = smul.addr %s170, 8
      %s172 = scalar_lea.vmem %s0, %s171
      %p173 = pneg %p49
      %p174 = pneg %p46
      %p175 = pneg %p70
      %p176 = pneg %p67
      %p177 = pneg %p91
      %p178 = pneg %p88
      %p179 = pneg %p119
      %p180 = pneg %p116
      %s181 = smul.u32 4, %s19
      %p182 = scmp.lt.s32.totalorder %s18, 1
      %s183 = scalar_select %p182, %s18, 1
      %p184 = scmp.lt.s32.totalorder %s181, 3
      %s185 = scalar_select %p184, %s181, 3
      %s186 = smul.addr %s183, 4
      %s187 = sadd.s32 %s185, %s186
      %s188 = smul.addr %s187, 8
      %s189 = scalar_lea.vmem %s3, %s188
      %s190 = smul.u32 4, %s19
      %p191 = scmp.lt.s32.totalorder %s18, 1
      %s192 = scalar_select %p191, %s18, 1
      %p193 = scmp.lt.s32.totalorder %s190, 3
      %s194 = scalar_select %p193, %s190, 3
      %s195 = smul.addr %s192, 16
      %s196 = sadd.s32 %s194, %s195
      %s197 = smul.addr %s196, 8
      %s198 = scalar_lea.vmem %s0, %s197
      %s199 = smul.u32 4, %s19
      %s200 = smul.u32 4, %s19
      %p201 = scmp.lt.s32.totalorder %s18, 1
      %s202 = scalar_select %p201, %s18, 1
      %p203 = scmp.lt.s32.totalorder %s200, 3
      %s204 = scalar_select %p203, %s200, 3
      %s205 = smul.addr %s202, 4
      %s206 = sadd.s32 %s204, %s205
      %s207 = smul.addr %s206, 8
      %s208 = scalar_lea.vmem %s3, %s207
      %s209 = smul.u32 4, %s19
      %v210 = vld [vmem:[%s1] sm:$0xff]
      %v211 = vld [vmem:[%s198] sm:$0xff]
      %v212 = vld [vmem:[%s198 + $0x8] sm:$0xff]
      %v213 = vld [vmem:[%s198 + $0x10] sm:$0xff]
      %v214 = vld [vmem:[%s198 + $0x18] sm:$0xff]
      %v215 = vld [vmem:[%s198 + $0x20] sm:$0xff]
      %v216 = vld [vmem:[%s198 + $0x28] sm:$0xff]
      %v217 = vld [vmem:[%s198 + $0x30] sm:$0xff]
      %v218 = vld [vmem:[%s198 + $0x38] sm:$0xff]
      %v219 = vld [vmem:[%s198 + $0x40] sm:$0xff]
      %v220 = vld [vmem:[%s198 + $0x48] sm:$0xff]
      %v221 = vld [vmem:[%s198 + $0x50] sm:$0xff]
      %v222 = vld [vmem:[%s198 + $0x58] sm:$0xff]
      %v223 = vld [vmem:[%s198 + $0x60] sm:$0xff]
      %v224 = vld [vmem:[%s198 + $0x68] sm:$0xff]
      %v225 = vld [vmem:[%s198 + $0x70] sm:$0xff]
      %v226 = vld [vmem:[%s198 + $0x78] sm:$0xff]
      %v227 = vld [vmem:[%s2] sm:$0xff]
      %229 = vset.pattern.permute.xlu0 0
      %230 = vperm.xlu0 %229, %v227
      %v231 = vpop.permute.xlu0 %230
      %vm233 = vcmask 261120
      %v235 = vsel %vm233, %v210, 0
      %237 = vmatprep.subr.mxu0 %v212
      %238 = vmatpush1.msra.mxu0 %v211
      %239 = vmatprep.subr.mxu0 %v216
      %240 = vmatpush1.msra.mxu0 %v215
      %241 = vmatprep.subr.mxu0 %v220
      %242 = vmatpush1.msra.mxu0 %v219
      %243 = vmatprep.subr.mxu0 %v224
      %244 = vmatpush1.msra.mxu0 %v223
      %245 = vmatprep.subr.mxu0 0.0
      %246 = vmatpush1.msra.mxu0 0.0
      %247 = vmatprep.subr.mxu0 0.0
      %248 = vmatpush1.msra.mxu0 0.0
      %249 = vmatprep.subr.mxu0 0.0
      %250 = vmatpush1.msra.mxu0 0.0
      %251 = vmatprep.subr.mxu0 0.0
      %252 = vmatpush1.msra.mxu0 0.0
      %253 = vmatprep.subr.mxu0 0.0
      %254 = vmatpush1.msra.mxu0 0.0
      %255 = vmatprep.subr.mxu0 0.0
      %256 = vmatpush1.msra.mxu0 0.0
      %257 = vmatprep.subr.mxu0 0.0
      %258 = vmatpush1.msra.mxu0 0.0
      %259 = vmatprep.subr.mxu0 0.0
      %260 = vmatpush1.msra.mxu0 0.0
      %261 = vmatprep.subr.mxu0 0.0
      %262 = vmatpush1.msra.mxu0 0.0
      %263 = vmatprep.subr.mxu0 0.0
      %264 = vmatpush1.msra.mxu0 0.0
      %265 = vmatprep.subr.mxu0 0.0
      %266 = vmatpush1.msra.mxu0 0.0
      %267 = vmatprep.subr.mxu0 0.0
      %268 = vmatpush1.msra.mxu0 0.0
      %269 = vmatprep.subr.mxu0 0.0
      %270 = vmatpush1.msra.mxu0 0.0
      %271 = vmatprep.subr.mxu0 0.0
      %272 = vmatpush1.msra.mxu0 0.0
      %273 = vmatprep.subr.mxu0 0.0
      %274 = vmatpush1.msra.mxu0 0.0
      %275 = vmatprep.subr.mxu0 0.0
      %276 = vmatpush1.msra.mxu0 0.0
      %277 = vmatprep.subr.mxu0 0.0
      %278 = vmatpush1.msra.mxu0 0.0
      %279 = vmatprep.subr.mxu0 0.0
      %280 = vmatpush1.msra.mxu0 0.0
      %281 = vmatprep.subr.mxu0 0.0
      %282 = vmatpush1.msra.mxu0 0.0
      %283 = vmatprep.subr.mxu0 0.0
      %284 = vmatpush1.msra.mxu0 0.0
      %285 = vmatprep.subr.mxu0 0.0
      %286 = vmatpush1.msra.mxu0 0.0
      %287 = vmatprep.subr.mxu0 0.0
      %288 = vmatpush1.msra.mxu0 0.0
      %289 = vmatprep.subr.mxu0 0.0
      %290 = vmatpush1.msra.mxu0 0.0
      %291 = vmatprep.subr.mxu0 0.0
      %292 = vmatpush1.msra.mxu0 0.0
      %293 = vmatprep.subr.mxu0 0.0
      %294 = vmatpush1.msra.mxu0 0.0
      %295 = vmatprep.subr.mxu0 0.0
      %296 = vmatpush1.msra.mxu0 0.0
      %297 = vmatprep.subr.mxu0 0.0
      %298 = vmatpush1.msra.mxu0 0.0
      %299 = vmatprep.subr.mxu0 0.0
      %300 = vmatpush1.msra.mxu0 0.0
      %301 = vmatprep.mubr.f32.mxu0 0.0
      %302 = vmatmul.mubr.f32.gmra.mrb[0].mxu0 %v235
      %v303 = vpop.f32.mrb[0].mxu0
      %v304 = vadd.f32 %v231, %v303
      %v305 = vpop.f32.mrb[0].mxu0
      %v306 = vadd.f32 %v231, %v305
      %307 = vdwg.mxu0
      %308 = vmatprep.subr.mxu0 %v214
      %309 = vmatpush1.msra.mxu0 %v213
      %310 = vmatprep.subr.mxu0 %v218
      %311 = vmatpush1.msra.mxu0 %v217
      %312 = vmatprep.subr.mxu0 %v222
      %313 = vmatpush1.msra.mxu0 %v221
      %314 = vmatprep.subr.mxu0 %v226
      %315 = vmatpush1.msra.mxu0 %v225
      %316 = vmatprep.subr.mxu0 0.0
      %317 = vmatpush1.msra.mxu0 0.0
      %318 = vmatprep.subr.mxu0 0.0
      %319 = vmatpush1.msra.mxu0 0.0
      %320 = vmatprep.subr.mxu0 0.0
      %321 = vmatpush1.msra.mxu0 0.0
      %322 = vmatprep.subr.mxu0 0.0
      %323 = vmatpush1.msra.mxu0 0.0
      %324 = vmatprep.subr.mxu0 0.0
      %325 = vmatpush1.msra.mxu0 0.0
      %326 = vmatprep.subr.mxu0 0.0
      %327 = vmatpush1.msra.mxu0 0.0
      %328 = vmatprep.subr.mxu0 0.0
      %329 = vmatpush1.msra.mxu0 0.0
      %330 = vmatprep.subr.mxu0 0.0
      %331 = vmatpush1.msra.mxu0 0.0
      %332 = vmatprep.subr.mxu0 0.0
      %333 = vmatpush1.msra.mxu0 0.0
      %334 = vmatprep.subr.mxu0 0.0
      %335 = vmatpush1.msra.mxu0 0.0
      %336 = vmatprep.subr.mxu0 0.0
      %337 = vmatpush1.msra.mxu0 0.0
      %338 = vmatprep.subr.mxu0 0.0
      %339 = vmatpush1.msra.mxu0 0.0
      %340 = vmatprep.subr.mxu0 0.0
      %341 = vmatpush1.msra.mxu0 0.0
      %342 = vmatprep.subr.mxu0 0.0
      %343 = vmatpush1.msra.mxu0 0.0
      %344 = vmatprep.subr.mxu0 0.0
      %345 = vmatpush1.msra.mxu0 0.0
      %346 = vmatprep.subr.mxu0 0.0
      %347 = vmatpush1.msra.mxu0 0.0
      %348 = vmatprep.subr.mxu0 0.0
      %349 = vmatpush1.msra.mxu0 0.0
      %350 = vmatprep.subr.mxu0 0.0
      %351 = vmatpush1.msra.mxu0 0.0
      %352 = vmatprep.subr.mxu0 0.0
      %353 = vmatpush1.msra.mxu0 0.0
      %354 = vmatprep.subr.mxu0 0.0
      %355 = vmatpush1.msra.mxu0 0.0
      %356 = vmatprep.subr.mxu0 0.0
      %357 = vmatpush1.msra.mxu0 0.0
      %358 = vmatprep.subr.mxu0 0.0
      %359 = vmatpush1.msra.mxu0 0.0
      %360 = vmatprep.subr.mxu0 0.0
      %361 = vmatpush1.msra.mxu0 0.0
      %362 = vmatprep.subr.mxu0 0.0
      %363 = vmatpush1.msra.mxu0 0.0
      %364 = vmatprep.subr.mxu0 0.0
      %365 = vmatpush1.msra.mxu0 0.0
      %366 = vmatprep.subr.mxu0 0.0
      %367 = vmatpush1.msra.mxu0 0.0
      %368 = vmatprep.subr.mxu0 0.0
      %369 = vmatpush1.msra.mxu0 0.0
      %370 = vmatprep.subr.mxu0 0.0
      %371 = vmatpush1.msra.mxu0 0.0
      %372 = vmatprep.mubr.f32.mxu0 0.0
      %373 = vmatmul.mubr.f32.gmra.mrb[0].mxu0 %v235
      %v374 = vpop.f32.mrb[0].mxu0
      %v375 = vadd.f32 %v231, %v374
      %v376 = vpop.f32.mrb[0].mxu0
      %v377 = vadd.f32 %v231, %v376
      %378 = vdwg.mxu0
      %v379 = vmax.f32 %v304, 0.0
      %v380 = vmax.f32 %v306, 0.0
      %v381 = vmax.f32 %v375, 0.0
      %v382 = vmax.f32 %v377, 0.0
      %383 = vst [vmem:[%s208] sm:$0xff] %v379
      %384 = vst [vmem:[%s208 + $0x8] sm:$0xff] %v380
      %385 = vst [vmem:[%s208 + $0x10] sm:$0xff] %v381
      %386 = vst [vmem:[%s208 + $0x18] sm:$0xff] %v382
      %s387 = smul.u32 4, %s19
      %p388 = scmp.lt.s32.totalorder %s18, 1
      %s389 = scalar_select %p388, %s18, 1
      %p390 = scmp.lt.s32.totalorder %s387, 3
      %s391 = scalar_select %p390, %s387, 3
      %s392 = smul.addr %s389, 4
      %s393 = sadd.s32 %s391, %s392
      %s394 = smul.addr %s393, 8
      %s395 = scalar_lea.vmem %s3, %s394
      // Predicated region
      $region33: #{downsampling_conv_block.1} parent=31 // pred_check
        %p396 = pneg %p116
      $region34: #{downsampling_conv_block.1} parent=31 // pred_check_branch
        %398 = sbr.rel (%p396) target = $region36
      $region35: #{downsampling_conv_block.1} parent=31 // pred_region
        %s399 = smul.u32 4, %s19
      $region36: #{downsampling_conv_block.1} parent=31 // pred_fallthru
        _
    $region32: #{downsampling_conv_block.1} parent=5 // pred_fallthru
      _
    %p400 = scmp.le.s32.totalorder 2, %s9
    // Predicated region
    $region37: #{downsampling_conv_block.1} parent=5 // pred_check
      %p401 = pneg %p400
    $region38: #{downsampling_conv_block.1} parent=5 // pred_check_branch
      %403 = sbr.rel (%p401) target = $region40
    $region39: #{downsampling_conv_block.1} parent=5 // pred_region
      %s404 = ssub.s32 %s9, 2
      // Predicated region
      $region41: #{downsampling_conv_block.1} parent=39 // pred_check
        %p405 = pneg %p122
      $region42: #{downsampling_conv_block.1} parent=39 // pred_check_branch
        %407 = sbr.rel (%p405) target = $region44
      $region43: #{downsampling_conv_block.1} parent=39 // pred_region
        %s408 = smul.u32 4, %s21
        %p409 = scmp.lt.s32.totalorder %s20, 1
        %s410 = scalar_select %p409, %s20, 1
        %p411 = scmp.lt.s32.totalorder %s408, 3
        %s412 = scalar_select %p411, %s408, 3
        %s413 = smul.addr %s410, 4
        %s414 = sadd.s32 %s412, %s413
        %s415 = smul.addr %s414, 8
        %s416 = scalar_lea.vmem %s3, %s415
      $region44: #{downsampling_conv_block.1} parent=39 // pred_fallthru
        _
    $region40: #{downsampling_conv_block.1} parent=5 // pred_fallthru
      _
  $region6: #{downsampling_conv_block.1} parent=0 // loop_footer
    %s13 = sadd.s32 1, %s9
  $region7: #{downsampling_conv_block.1} parent=0 // loop_footer_branch
    %8 = sbr.rel target = $region3
  $region8: #{downsampling_conv_block.1} parent=0 // loop_exit
    _

</llo_original>
